<compile_context>
chip_gen: v5e
topology: v5e:2x2
jax: 0.10.0
libtpu: 0.0.40
codegen_flags: <defaults>
</compile_context>

<pallas_src>
import functools

import jax
import jax.numpy as jnp
from jax.experimental import pallas as pl
from jax.experimental.pallas import tpu as pltpu


def _round_up(x, m):
    return ((x + m - 1) // m) * m


def vae_kernel(x_ref, we_ref, be_ref, wml_ref, bml_ref, wd_ref, bd_ref, eps_ref,
               mlz_ref, recon_ref):
    L = wml_ref.shape[1] // 2

    # Cast x on the (idle) VPU inside the kernel; HBM only moves x once as f32.
    x_bf16 = x_ref[...].astype(we_ref.dtype)

    # encoder: hidden = relu(x @ We + be)   (bf16 MXU operands, f32 accumulation)
    hidden = jnp.dot(x_bf16, we_ref[...], preferred_element_type=jnp.float32)
    hidden = jnp.maximum(hidden + be_ref[...], 0.0)

    # fused mu|logvar head: one lane-dense N = 2L matmul, then split.
    ml = jnp.dot(hidden.astype(wml_ref.dtype), wml_ref[...],
                 preferred_element_type=jnp.float32) + bml_ref[...]
    mu = ml[:, :L]
    logvar = ml[:, L:]

    # reparameterization: z = mu + exp(0.5 * logvar) * eps   (f32 VPU/EUP math)
    std = jnp.exp(0.5 * logvar)
    z = mu + std * eps_ref[...]

    # decoder: recon = sigmoid(z @ Wd + bd)
    logits = jnp.dot(z.astype(wd_ref.dtype), wd_ref[...],
                     preferred_element_type=jnp.float32) + bd_ref[...]
    recon_ref[...] = jax.nn.sigmoid(logits)

    # packed lane-dense output slab: [mu | logvar | z]
    # (ml is already a contiguous 2L-lane MXU result -> unmasked stores; only the
    #  trailing 64-lane z needs sub-vreg placement)
    mlz_ref[...] = jnp.concatenate([ml, z], axis=-1)


def _pick_batch_tile(B, batch_tile):
    """Batch tile: multiple of 8, capped so the grid has >= 2 steps when possible
    (lets v7x's two TensorCores split the 'parallel' batch axis)."""
    Bp8 = _round_up(B, 8)
    half_cap = max(8, _round_up(Bp8, 16) // 2)
    return min(_round_up(batch_tile, 8), half_cap)


@functools.partial(jax.jit, static_argnames=("batch_tile", "single_buffer_weights"))
def _vae_forward(x, params, eps, *, batch_tile, single_buffer_weights):
    B, D = x.shape
    H = params["We"].shape[1]
    L = params["Wml"].shape[1] // 2

    TB = _pick_batch_tile(B, batch_tile)
    Bp = _round_up(B, TB)
    if Bp != B:
        # Only ragged batches pad, and only the tail tile's worth of f32 rows.
        x = jnp.pad(x, ((0, Bp - B), (0, 0)))
        eps = jnp.pad(eps, ((0, Bp - B), (0, 0)))

    grid = (Bp // TB,)
    n_weight_bufs = 1 if single_buffer_weights else 2

    def resident_spec(shape):
        # Constant-index (grid-invariant) weight/bias blocks stay VMEM-resident;
        # request single buffering so they don't cost 2x VMEM.
        if single_buffer_weights:
            return pl.BlockSpec(shape, lambda i: (0, 0),
                                pipeline_mode=pl.Buffered(1))
        return pl.BlockSpec(shape, lambda i: (0, 0))

    # --- VMEM budget (resident weights x actual buffer count, double-buffered
    #     activation tiles, f32 intermediates + bf16 cast temps) ---
    weight_bytes = ((D * H + H * 2 * L + L * D) * 2
                    + (H + 2 * L + D) * 4) * n_weight_bufs
    act_in_bytes = 2 * TB * (D + L) * 4            # x + eps tiles (f32), 2 buffers
    act_out_bytes = 2 * TB * (3 * L + D) * 4       # mlz + recon tiles (f32), 2 buffers
    interm_bytes = TB * (H + 2 * L + 2 * L + D) * 4 + TB * (D + H + L) * 2
    est = weight_bytes + act_in_bytes + act_out_bytes + interm_bytes
    vmem_limit = int(min(max(2 * est, 32 * 1024 * 1024), 48 * 1024 * 1024))

    cost = pl.CostEstimate(
        flops=2 * Bp * (D * H + H * 2 * L + L * D),
        transcendentals=Bp * (L + D),              # exp(0.5*logvar) + sigmoid
        bytes_accessed=(Bp * (D + L) * 4           # x, eps in (f32)
                        + (D * H + H * 2 * L + L * D) * 2 + (H + 2 * L + D) * 4
                        + Bp * (3 * L + D) * 4),   # mlz, recon out (f32)
    )

    out_shapes = (
        jax.ShapeDtypeStruct((Bp, 3 * L), jnp.float32),  # packed [mu | logvar | z]
        jax.ShapeDtypeStruct((Bp, D), jnp.float32),      # recon
    )

    mlz, recon = pl.pallas_call(
        vae_kernel,
        out_shape=out_shapes,
        grid_spec=pltpu.PrefetchScalarGridSpec(
            num_scalar_prefetch=0,
            grid=grid,
            in_specs=[
                pl.BlockSpec((TB, D), lambda i: (i, 0)),   # x  (batch-tiled, f32)
                resident_spec((D, H)),                     # We
                resident_spec((1, H)),                     # be
                resident_spec((H, 2 * L)),                 # Wml (fused mu|logvar)
                resident_spec((1, 2 * L)),                 # bml
                resident_spec((L, D)),                     # Wd
                resident_spec((1, D)),                     # bd
                pl.BlockSpec((TB, L), lambda i: (i, 0)),   # eps (batch-tiled)
            ],
            out_specs=(
                pl.BlockSpec((TB, 3 * L), lambda i: (i, 0)),  # packed mu|logvar|z
                pl.BlockSpec((TB, D), lambda i: (i, 0)),      # recon
            ),
        ),
        compiler_params=pltpu.CompilerParams(
            dimension_semantics=("parallel",),     # v7x: 2 TCs split the batch axis
            vmem_limit_bytes=vmem_limit,
        ),
        cost_estimate=cost,
    )(
        x,
        params["We"], params["be"],
        params["Wml"], params["bml"],
        params["Wd"], params["bd"],
        eps,
    )

    mu = mlz[:B, :L]
    logvar = mlz[:B, L:2 * L]
    z = mlz[:B, 2 * L:]
    return z, mu, logvar, recon[:B]


def vae_forward(x, params, eps, *, batch_tile=512):
    """Full VAE forward pass in one Pallas kernel.

    x:      [B, input_dim]  float32
    eps:    [B, latent_dim] float32 (external Gaussian noise, like torch.randn_like)
    params: dict with bf16 transposed weights (in, out) and f32 (1, out) biases;
            mu/logvar weights pre-fused into Wml/bml of width 2*latent_dim.
    Returns (z, mu, logvar, recon_output), all float32, like the PyTorch module.
    """
    try:
        out = _vae_forward(x, params, eps, batch_tile=batch_tile,
                           single_buffer_weights=True)
        return jax.block_until_ready(out)
    except Exception:
        # Fallback if this jax build rejects pl.Buffered(1) single-buffering on
        # the constant-index weight blocks; semantics are identical.
        out = _vae_forward(x, params, eps, batch_tile=batch_tile,
                           single_buffer_weights=False)
        return jax.block_until_ready(out)


def init_params(key, input_dim, hidden_dim, latent_dim):
    """PyTorch-nn.Linear-style init (uniform +/- 1/sqrt(fan_in)).
    Weights stored pre-transposed (fan_in, fan_out) in bf16 (MXU operands),
    biases in f32. mu and logvar heads fused into one (H, 2L) weight."""
    def linear(k, fan_in, fan_out):
        kw, kb = jax.random.split(k)
        bound = 1.0 / jnp.sqrt(float(fan_in))
        w_t = jax.random.uniform(kw, (fan_in, fan_out), jnp.float32, -bound, bound)
        b = jax.random.uniform(kb, (1, fan_out), jnp.float32, -bound, bound)
        return w_t, b

    k1, k2, k3, k4 = jax.random.split(key, 4)
    We, be = linear(k1, input_dim, hidden_dim)
    Wmu, bmu = linear(k2, hidden_dim, latent_dim)
    Wlv, blv = linear(k3, hidden_dim, latent_dim)
    Wd, bd = linear(k4, latent_dim, input_dim)

    Wml = jnp.concatenate([Wmu, Wlv], axis=1)   # [H, 2L] lane-dense fused head
    bml = jnp.concatenate([bmu, blv], axis=1)   # [1, 2L]

    return {
        "We": We.astype(jnp.bfloat16), "be": be,
        "Wml": Wml.astype(jnp.bfloat16), "bml": bml,
        "Wd": Wd.astype(jnp.bfloat16), "bd": bd,
    }


if __name__ == "__main__":
    # Shapes consistent with VAE(input_dim, hidden_dim, latent_dim)
    input_dim, hidden_dim, latent_dim = 256, 128, 64
    L = latent_dim

    key = jax.random.PRNGKey(0)
    kx, keps, kp = jax.random.split(key, 3)
    params = init_params(kp, input_dim, hidden_dim, latent_dim)

    # f32 reference with the same (bf16-quantized) weight values — same math as
    # the PyTorch forward.
    We_f = params["We"].astype(jnp.float32)
    Wml_f = params["Wml"].astype(jnp.float32)
    Wd_f = params["Wd"].astype(jnp.float32)

    def reference(x, eps):
        h = jnp.maximum(x @ We_f + params["be"], 0.0)
        mu = h @ Wml_f[:, :L] + params["bml"][:, :L]
        lv = h @ Wml_f[:, L:] + params["bml"][:, L:]
        z = mu + jnp.exp(0.5 * lv) * eps
        recon = jax.nn.sigmoid(z @ Wd_f + params["bd"])
        return z, mu, lv, recon

    # bf16 matmul operands (f32 accumulation) => loosened tolerance vs f32 ref.
    tol = dict(atol=5e-2, rtol=5e-2)
    ok = True
    # B=8: single-tile path; B=200: multi-step grid (2 parallel steps) + padded
    # ragged tail tile.
    for B in (8, 200):
        x = jax.random.normal(jax.random.fold_in(kx, B), (B, input_dim), jnp.float32)
        # eps = torch.randn_like(std): generated outside the kernel for exact parity.
        # TODO(synk): could use pltpu.prng_seed + pltpu.stateful_normal in-kernel,
        # but that changes the random stream vs. externally generated noise.
        eps = jax.random.normal(jax.random.fold_in(keps, B), (B, latent_dim),
                                jnp.float32)

        z, mu, logvar, recon = vae_forward(x, params, eps)
        jax.block_until_ready((z, mu, logvar, recon))

        z_r, mu_r, lv_r, rec_r = reference(x, eps)
        ok &= bool(jnp.allclose(mu, mu_r, **tol))
        ok &= bool(jnp.allclose(logvar, lv_r, **tol))
        ok &= bool(jnp.allclose(z, z_r, **tol))
        ok &= bool(jnp.allclose(recon, rec_r, **tol))

    assert ok, "Pallas VAE kernel mismatch vs f32 reference"
    print("KERNEL_OK")
</pallas_src>

<mosaic_0001>
module attributes {stable_mosaic.version = 11 : i64} {
  func.func @vae_kernel(%arg0: i32, %arg1: memref<8x256xf32, #tpu.memory_space<vmem>>, %arg2: memref<256x128xbf16, #tpu.memory_space<vmem>>, %arg3: memref<1x128xf32, #tpu.memory_space<vmem>>, %arg4: memref<128x128xbf16, #tpu.memory_space<vmem>>, %arg5: memref<1x128xf32, #tpu.memory_space<vmem>>, %arg6: memref<64x256xbf16, #tpu.memory_space<vmem>>, %arg7: memref<1x256xf32, #tpu.memory_space<vmem>>, %arg8: memref<8x64xf32, #tpu.memory_space<vmem>>, %arg9: memref<8x192xf32, #tpu.memory_space<vmem>>, %arg10: memref<8x256xf32, #tpu.memory_space<vmem>>) attributes {dimension_semantics = [#tpu.dimension_semantics<parallel>], iteration_bounds = array<i64: 1>, scalar_prefetch = 0 : i64, scratch_operands = 0 : i64, tpu.core_type = #tpu.core_type<tc>, window_params = [{transform_indices = @transform_0, window_bounds = array<i64: 8, 256>}, {pipeline_mode = #tpu.pipeline_mode<synchronous>, transform_indices = @transform_1, window_bounds = array<i64: 256, 128>}, {pipeline_mode = #tpu.pipeline_mode<synchronous>, transform_indices = @transform_2, window_bounds = array<i64: 1, 128>}, {pipeline_mode = #tpu.pipeline_mode<synchronous>, transform_indices = @transform_3, window_bounds = array<i64: 128, 128>}, {pipeline_mode = #tpu.pipeline_mode<synchronous>, transform_indices = @transform_4, window_bounds = array<i64: 1, 128>}, {pipeline_mode = #tpu.pipeline_mode<synchronous>, transform_indices = @transform_5, window_bounds = array<i64: 64, 256>}, {pipeline_mode = #tpu.pipeline_mode<synchronous>, transform_indices = @transform_6, window_bounds = array<i64: 1, 256>}, {transform_indices = @transform_7, window_bounds = array<i64: 8, 64>}, {transform_indices = @transform_8, window_bounds = array<i64: 8, 192>}, {transform_indices = @transform_9, window_bounds = array<i64: 8, 256>}]} {
    %c0 = arith.constant 0 : index
    %c0_0 = arith.constant 0 : index
    %0 = vector.load %arg1[%c0, %c0_0] : memref<8x256xf32, #tpu.memory_space<vmem>>, vector<8x256xf32>
    %1 = arith.truncf %0 : vector<8x256xf32> to vector<8x256xbf16>
    %c0_1 = arith.constant 0 : index
    %c0_2 = arith.constant 0 : index
    %2 = vector.load %arg2[%c0_1, %c0_2] : memref<256x128xbf16, #tpu.memory_space<vmem>>, vector<256x128xbf16>
    %cst = arith.constant dense<0.000000e+00> : vector<8x128xf32>
    %3 = tpu.matmul %1, %2, %cst {dimension_numbers = #tpu.dot_dimension_numbers<[1], [0], [0], [1], [0, 0, 1, 1], [], []>} : vector<8x256xbf16>, vector<256x128xbf16>, vector<8x128xf32> -> vector<8x128xf32>
    %c0_3 = arith.constant 0 : index
    %c0_4 = arith.constant 0 : index
    %4 = vector.load %arg3[%c0_3, %c0_4] : memref<1x128xf32, #tpu.memory_space<vmem>>, vector<1x128xf32>
    %5 = vector.broadcast %4 : vector<1x128xf32> to vector<8x128xf32>
    %6 = arith.addf %3, %5 : vector<8x128xf32>
    %cst_5 = arith.constant 0.000000e+00 : f32
    %7 = vector.broadcast %cst_5 : f32 to vector<8x128xf32>
    %8 = arith.maximumf %6, %7 : vector<8x128xf32>
    %9 = arith.truncf %8 : vector<8x128xf32> to vector<8x128xbf16>
    %c0_6 = arith.constant 0 : index
    %c0_7 = arith.constant 0 : index
    %10 = vector.load %arg4[%c0_6, %c0_7] : memref<128x128xbf16, #tpu.memory_space<vmem>>, vector<128x128xbf16>
    %cst_8 = arith.constant dense<0.000000e+00> : vector<8x128xf32>
    %11 = tpu.matmul %9, %10, %cst_8 {dimension_numbers = #tpu.dot_dimension_numbers<[1], [0], [0], [1], [0, 0, 1, 1], [], []>} : vector<8x128xbf16>, vector<128x128xbf16>, vector<8x128xf32> -> vector<8x128xf32>
    %c0_9 = arith.constant 0 : index
    %c0_10 = arith.constant 0 : index
    %12 = vector.load %arg5[%c0_9, %c0_10] : memref<1x128xf32, #tpu.memory_space<vmem>>, vector<1x128xf32>
    %13 = vector.broadcast %12 : vector<1x128xf32> to vector<8x128xf32>
    %14 = arith.addf %11, %13 : vector<8x128xf32>
    %15 = vector.extract_strided_slice %14 {offsets = [0, 0], sizes = [8, 64], strides = [1, 1]} : vector<8x128xf32> to vector<8x64xf32>
    %16 = vector.extract_strided_slice %14 {offsets = [0, 64], sizes = [8, 64], strides = [1, 1]} : vector<8x128xf32> to vector<8x64xf32>
    %cst_11 = arith.constant 5.000000e-01 : f32
    %17 = vector.broadcast %cst_11 : f32 to vector<8x64xf32>
    %18 = arith.mulf %17, %16 : vector<8x64xf32>
    %19 = math.exp %18 : vector<8x64xf32>
    %c0_12 = arith.constant 0 : index
    %c0_13 = arith.constant 0 : index
    %20 = vector.load %arg8[%c0_12, %c0_13] : memref<8x64xf32, #tpu.memory_space<vmem>>, vector<8x64xf32>
    %21 = arith.mulf %19, %20 : vector<8x64xf32>
    %22 = arith.addf %15, %21 : vector<8x64xf32>
    %23 = arith.truncf %22 : vector<8x64xf32> to vector<8x64xbf16>
    %c0_14 = arith.constant 0 : index
    %c0_15 = arith.constant 0 : index
    %24 = vector.load %arg6[%c0_14, %c0_15] : memref<64x256xbf16, #tpu.memory_space<vmem>>, vector<64x256xbf16>
    %cst_16 = arith.constant dense<0.000000e+00> : vector<8x256xf32>
    %25 = tpu.matmul %23, %24, %cst_16 {dimension_numbers = #tpu.dot_dimension_numbers<[1], [0], [0], [1], [0, 0, 1, 1], [], []>} : vector<8x64xbf16>, vector<64x256xbf16>, vector<8x256xf32> -> vector<8x256xf32>
    %c0_17 = arith.constant 0 : index
    %c0_18 = arith.constant 0 : index
    %26 = vector.load %arg7[%c0_17, %c0_18] : memref<1x256xf32, #tpu.memory_space<vmem>>, vector<1x256xf32>
    %27 = vector.broadcast %26 : vector<1x256xf32> to vector<8x256xf32>
    %28 = arith.addf %25, %27 : vector<8x256xf32>
    %29 = arith.negf %28 : vector<8x256xf32>
    %30 = math.exp %29 : vector<8x256xf32>
    %cst_19 = arith.constant 1.000000e+00 : f32
    %31 = vector.broadcast %cst_19 : f32 to vector<8x256xf32>
    %32 = arith.addf %31, %30 : vector<8x256xf32>
    %33 = arith.divf %31, %32 : vector<8x256xf32>
    %c0_20 = arith.constant 0 : index
    %c0_21 = arith.constant 0 : index
    %34 = vector.load %arg10[%c0_20, %c0_21] : memref<8x256xf32, #tpu.memory_space<vmem>>, vector<8x256xf32>
    tpu.vector_store %arg10[%c0_20, %c0_21], %33 {strides = array<i32>} : memref<8x256xf32, #tpu.memory_space<vmem>>, vector<8x256xf32>,
    %35 = tpu.concatenate %14, %22 in 1 : vector<8x128xf32>, vector<8x64xf32> -> vector<8x192xf32>
    %c0_22 = arith.constant 0 : index
    %c0_23 = arith.constant 0 : index
    %36 = vector.load %arg9[%c0_22, %c0_23] : memref<8x192xf32, #tpu.memory_space<vmem>>, vector<8x192xf32>
    tpu.vector_store %arg9[%c0_22, %c0_23], %35 {strides = array<i32>} : memref<8x192xf32, #tpu.memory_space<vmem>>, vector<8x192xf32>,
    return
  }
  func.func @transform_0(%arg0: i32) -> (i32, i32) {
    %c0_i32 = arith.constant 0 : i32
    %c0_i32_0 = arith.constant 0 : i32
    return %arg0, %c0_i32 : i32, i32
  }
  func.func @transform_1(%arg0: i32) -> (i32, i32) {
    %c0_i32 = arith.constant 0 : i32
    %c0_i32_0 = arith.constant 0 : i32
    %c0_i32_1 = arith.constant 0 : i32
    return %c0_i32, %c0_i32_0 : i32, i32
  }
  func.func @transform_2(%arg0: i32) -> (i32, i32) {
    %c0_i32 = arith.constant 0 : i32
    %c0_i32_0 = arith.constant 0 : i32
    %c0_i32_1 = arith.constant 0 : i32
    return %c0_i32, %c0_i32_0 : i32, i32
  }
  func.func @transform_3(%arg0: i32) -> (i32, i32) {
    %c0_i32 = arith.constant 0 : i32
    %c0_i32_0 = arith.constant 0 : i32
    %c0_i32_1 = arith.constant 0 : i32
    return %c0_i32, %c0_i32_0 : i32, i32
  }
  func.func @transform_4(%arg0: i32) -> (i32, i32) {
    %c0_i32 = arith.constant 0 : i32
    %c0_i32_0 = arith.constant 0 : i32
    %c0_i32_1 = arith.constant 0 : i32
    return %c0_i32, %c0_i32_0 : i32, i32
  }
  func.func @transform_5(%arg0: i32) -> (i32, i32) {
    %c0_i32 = arith.constant 0 : i32
    %c0_i32_0 = arith.constant 0 : i32
    %c0_i32_1 = arith.constant 0 : i32
    return %c0_i32, %c0_i32_0 : i32, i32
  }
  func.func @transform_6(%arg0: i32) -> (i32, i32) {
    %c0_i32 = arith.constant 0 : i32
    %c0_i32_0 = arith.constant 0 : i32
    %c0_i32_1 = arith.constant 0 : i32
    return %c0_i32, %c0_i32_0 : i32, i32
  }
  func.func @transform_7(%arg0: i32) -> (i32, i32) {
    %c0_i32 = arith.constant 0 : i32
    %c0_i32_0 = arith.constant 0 : i32
    return %arg0, %c0_i32 : i32, i32
  }
  func.func @transform_8(%arg0: i32) -> (i32, i32) {
    %c0_i32 = arith.constant 0 : i32
    %c0_i32_0 = arith.constant 0 : i32
    return %arg0, %c0_i32 : i32, i32
  }
  func.func @transform_9(%arg0: i32) -> (i32, i32) {
    %c0_i32 = arith.constant 0 : i32
    %c0_i32_0 = arith.constant 0 : i32
    return %arg0, %c0_i32 : i32, i32
  }
}

module attributes {stable_mosaic.version = 11 : i64} {
  func.func @vae_kernel(%arg0: i32, %arg1: memref<8x256xf32, #tpu.memory_space<vmem>>, %arg2: memref<256x128xbf16, #tpu.memory_space<vmem>>, %arg3: memref<1x128xf32, #tpu.memory_space<vmem>>, %arg4: memref<128x128xbf16, #tpu.memory_space<vmem>>, %arg5: memref<1x128xf32, #tpu.memory_space<vmem>>, %arg6: memref<64x256xbf16, #tpu.memory_space<vmem>>, %arg7: memref<1x256xf32, #tpu.memory_space<vmem>>, %arg8: memref<8x64xf32, #tpu.memory_space<vmem>>, %arg9: memref<8x192xf32, #tpu.memory_space<vmem>>, %arg10: memref<8x256xf32, #tpu.memory_space<vmem>>) attributes {dimension_semantics = [#tpu.dimension_semantics<parallel>], iteration_bounds = array<i64: 1>, scalar_prefetch = 0 : i64, scratch_operands = 0 : i64, tpu.core_type = #tpu.core_type<tc>, window_params = [{transform_indices = @transform_0, window_bounds = array<i64: 8, 256>}, {pipeline_mode = #tpu.pipeline_mode<synchronous>, transform_indices = @transform_1, window_bounds = array<i64: 256, 128>}, {pipeline_mode = #tpu.pipeline_mode<synchronous>, transform_indices = @transform_2, window_bounds = array<i64: 1, 128>}, {pipeline_mode = #tpu.pipeline_mode<synchronous>, transform_indices = @transform_3, window_bounds = array<i64: 128, 128>}, {pipeline_mode = #tpu.pipeline_mode<synchronous>, transform_indices = @transform_4, window_bounds = array<i64: 1, 128>}, {pipeline_mode = #tpu.pipeline_mode<synchronous>, transform_indices = @transform_5, window_bounds = array<i64: 64, 256>}, {pipeline_mode = #tpu.pipeline_mode<synchronous>, transform_indices = @transform_6, window_bounds = array<i64: 1, 256>}, {transform_indices = @transform_7, window_bounds = array<i64: 8, 64>}, {transform_indices = @transform_8, window_bounds = array<i64: 8, 192>}, {transform_indices = @transform_9, window_bounds = array<i64: 8, 256>}]} {
    %c0 = arith.constant 0 : index
    %c0_0 = arith.constant 0 : index
    %0 = vector.load %arg1[%c0, %c0_0] : memref<8x256xf32, #tpu.memory_space<vmem>>, vector<8x256xf32>
    %1 = arith.truncf %0 : vector<8x256xf32> to vector<8x256xbf16>
    %c0_1 = arith.constant 0 : index
    %c0_2 = arith.constant 0 : index
    %2 = vector.load %arg2[%c0_1, %c0_2] : memref<256x128xbf16, #tpu.memory_space<vmem>>, vector<256x128xbf16>
    %cst = arith.constant dense<0.000000e+00> : vector<8x128xf32>
    %3 = tpu.matmul %1, %2, %cst {dimension_numbers = #tpu.dot_dimension_numbers<[1], [0], [0], [1], [0, 0, 1, 1], [], []>} : vector<8x256xbf16>, vector<256x128xbf16>, vector<8x128xf32> -> vector<8x128xf32>
    %c0_3 = arith.constant 0 : index
    %c0_4 = arith.constant 0 : index
    %4 = vector.load %arg3[%c0_3, %c0_4] : memref<1x128xf32, #tpu.memory_space<vmem>>, vector<1x128xf32>
    %5 = vector.broadcast %4 : vector<1x128xf32> to vector<8x128xf32>
    %6 = arith.addf %3, %5 : vector<8x128xf32>
    %cst_5 = arith.constant 0.000000e+00 : f32
    %7 = vector.broadcast %cst_5 : f32 to vector<8x128xf32>
    %8 = arith.maximumf %6, %7 : vector<8x128xf32>
    %9 = arith.truncf %8 : vector<8x128xf32> to vector<8x128xbf16>
    %c0_6 = arith.constant 0 : index
    %c0_7 = arith.constant 0 : index
    %10 = vector.load %arg4[%c0_6, %c0_7] : memref<128x128xbf16, #tpu.memory_space<vmem>>, vector<128x128xbf16>
    %cst_8 = arith.constant dense<0.000000e+00> : vector<8x128xf32>
    %11 = tpu.matmul %9, %10, %cst_8 {dimension_numbers = #tpu.dot_dimension_numbers<[1], [0], [0], [1], [0, 0, 1, 1], [], []>} : vector<8x128xbf16>, vector<128x128xbf16>, vector<8x128xf32> -> vector<8x128xf32>
    %c0_9 = arith.constant 0 : index
    %c0_10 = arith.constant 0 : index
    %12 = vector.load %arg5[%c0_9, %c0_10] : memref<1x128xf32, #tpu.memory_space<vmem>>, vector<1x128xf32>
    %13 = vector.broadcast %12 : vector<1x128xf32> to vector<8x128xf32>
    %14 = arith.addf %11, %13 : vector<8x128xf32>
    %15 = vector.extract_strided_slice %14 {offsets = [0, 0], sizes = [8, 64], strides = [1, 1]} : vector<8x128xf32> to vector<8x64xf32>
    %16 = vector.extract_strided_slice %14 {offsets = [0, 64], sizes = [8, 64], strides = [1, 1]} : vector<8x128xf32> to vector<8x64xf32>
    %cst_11 = arith.constant 5.000000e-01 : f32
    %17 = vector.broadcast %cst_11 : f32 to vector<8x64xf32>
    %18 = arith.mulf %17, %16 : vector<8x64xf32>
    %19 = math.exp %18 : vector<8x64xf32>
    %c0_12 = arith.constant 0 : index
    %c0_13 = arith.constant 0 : index
    %20 = vector.load %arg8[%c0_12, %c0_13] : memref<8x64xf32, #tpu.memory_space<vmem>>, vector<8x64xf32>
    %21 = arith.mulf %19, %20 : vector<8x64xf32>
    %22 = arith.addf %15, %21 : vector<8x64xf32>
    %23 = arith.truncf %22 : vector<8x64xf32> to vector<8x64xbf16>
    %c0_14 = arith.constant 0 : index
    %c0_15 = arith.constant 0 : index
    %24 = vector.load %arg6[%c0_14, %c0_15] : memref<64x256xbf16, #tpu.memory_space<vmem>>, vector<64x256xbf16>
    %cst_16 = arith.constant dense<0.000000e+00> : vector<8x256xf32>
    %25 = tpu.matmul %23, %24, %cst_16 {dimension_numbers = #tpu.dot_dimension_numbers<[1], [0], [0], [1], [0, 0, 1, 1], [], []>} : vector<8x64xbf16>, vector<64x256xbf16>, vector<8x256xf32> -> vector<8x256xf32>
    %c0_17 = arith.constant 0 : index
    %c0_18 = arith.constant 0 : index
    %26 = vector.load %arg7[%c0_17, %c0_18] : memref<1x256xf32, #tpu.memory_space<vmem>>, vector<1x256xf32>
    %27 = vector.broadcast %26 : vector<1x256xf32> to vector<8x256xf32>
    %28 = arith.addf %25, %27 : vector<8x256xf32>
    %29 = arith.negf %28 : vector<8x256xf32>
    %30 = math.exp %29 : vector<8x256xf32>
    %cst_19 = arith.constant 1.000000e+00 : f32
    %31 = vector.broadcast %cst_19 : f32 to vector<8x256xf32>
    %32 = arith.addf %31, %30 : vector<8x256xf32>
    %33 = arith.divf %31, %32 : vector<8x256xf32>
    %c0_20 = arith.constant 0 : index
    %c0_21 = arith.constant 0 : index
    %34 = vector.load %arg10[%c0_20, %c0_21] : memref<8x256xf32, #tpu.memory_space<vmem>>, vector<8x256xf32>
    tpu.vector_store %arg10[%c0_20, %c0_21], %33 {strides = array<i32>} : memref<8x256xf32, #tpu.memory_space<vmem>>, vector<8x256xf32>,
    %35 = tpu.concatenate %14, %22 in 1 : vector<8x128xf32>, vector<8x64xf32> -> vector<8x192xf32>
    %c0_22 = arith.constant 0 : index
    %c0_23 = arith.constant 0 : index
    %36 = vector.load %arg9[%c0_22, %c0_23] : memref<8x192xf32, #tpu.memory_space<vmem>>, vector<8x192xf32>
    tpu.vector_store %arg9[%c0_22, %c0_23], %35 {strides = array<i32>} : memref<8x192xf32, #tpu.memory_space<vmem>>, vector<8x192xf32>,
    return
  }
  func.func @transform_0(%arg0: i32) -> (i32, i32) {
    %c0_i32 = arith.constant 0 : i32
    %c0_i32_0 = arith.constant 0 : i32
    return %arg0, %c0_i32 : i32, i32
  }
  func.func @transform_1(%arg0: i32) -> (i32, i32) {
    %c0_i32 = arith.constant 0 : i32
    %c0_i32_0 = arith.constant 0 : i32
    %c0_i32_1 = arith.constant 0 : i32
    return %c0_i32, %c0_i32_0 : i32, i32
  }
  func.func @transform_2(%arg0: i32) -> (i32, i32) {
    %c0_i32 = arith.constant 0 : i32
    %c0_i32_0 = arith.constant 0 : i32
    %c0_i32_1 = arith.constant 0 : i32
    return %c0_i32, %c0_i32_0 : i32, i32
  }
  func.func @transform_3(%arg0: i32) -> (i32, i32) {
    %c0_i32 = arith.constant 0 : i32
    %c0_i32_0 = arith.constant 0 : i32
    %c0_i32_1 = arith.constant 0 : i32
    return %c0_i32, %c0_i32_0 : i32, i32
  }
  func.func @transform_4(%arg0: i32) -> (i32, i32) {
    %c0_i32 = arith.constant 0 : i32
    %c0_i32_0 = arith.constant 0 : i32
    %c0_i32_1 = arith.constant 0 : i32
    return %c0_i32, %c0_i32_0 : i32, i32
  }
  func.func @transform_5(%arg0: i32) -> (i32, i32) {
    %c0_i32 = arith.constant 0 : i32
    %c0_i32_0 = arith.constant 0 : i32
    %c0_i32_1 = arith.constant 0 : i32
    return %c0_i32, %c0_i32_0 : i32, i32
  }
  func.func @transform_6(%arg0: i32) -> (i32, i32) {
    %c0_i32 = arith.constant 0 : i32
    %c0_i32_0 = arith.constant 0 : i32
    %c0_i32_1 = arith.constant 0 : i32
    return %c0_i32, %c0_i32_0 : i32, i32
  }
  func.func @transform_7(%arg0: i32) -> (i32, i32) {
    %c0_i32 = arith.constant 0 : i32
    %c0_i32_0 = arith.constant 0 : i32
    return %arg0, %c0_i32 : i32, i32
  }
  func.func @transform_8(%arg0: i32) -> (i32, i32) {
    %c0_i32 = arith.constant 0 : i32
    %c0_i32_0 = arith.constant 0 : i32
    return %arg0, %c0_i32 : i32, i32
  }
  func.func @transform_9(%arg0: i32) -> (i32, i32) {
    %c0_i32 = arith.constant 0 : i32
    %c0_i32_0 = arith.constant 0 : i32
    return %arg0, %c0_i32 : i32, i32
  }
}

</mosaic_0001>

<llo_original>
// kernel: _vae_forward.1
$region0: #{_vae_forward.1}
  #allocation0 [shape = 'u32[]', space=smem, size = 0x4, offset = 0x4, fixed_abs, tag = 'smem constant byte address 0x4 - core index']
  #allocation1 [shape = 'u32[72,128]{1,0:T(1,128)}', space=vmem, size = 0x9000, scoped, tag = 'internal scratch']
  %s0 = inlined_call_operand.hbm [shape: f32[8,256], index: 0, kind: input, shape index: {}]
  %s1 = inlined_call_operand.hbm [shape: bf16[256,128], index: 1, kind: input, shape index: {}]
  %s2 = inlined_call_operand.vmem [shape: f32[1,128], index: 2, kind: input, shape index: {}]
  %s3 = inlined_call_operand.hbm [shape: bf16[128,128], index: 3, kind: input, shape index: {}]
  %s4 = inlined_call_operand.vmem [shape: f32[1,128], index: 4, kind: input, shape index: {}]
  %s5 = inlined_call_operand.hbm [shape: bf16[64,256], index: 5, kind: input, shape index: {}]
  %s6 = inlined_call_operand.vmem [shape: f32[1,256], index: 6, kind: input, shape index: {}]
  %s7 = inlined_call_operand.hbm [shape: f32[8,64], index: 7, kind: input, shape index: {}]
  %s8 = inlined_call_operand.vmem [shape: f32[8,192], index: 8, kind: output, shape index: {0}]
  %s9 = inlined_call_operand.hbm [shape: f32[8,256], index: 9, kind: output, shape index: {1}]
  %10 = xla_tuple %s8, %s9
  %s11 = sld [smem:[#allocation0]]
  $region70: #{_vae_forward.1} parent=0
    _
  %s13 = ssub.s32 1, %s11
  %s14 = scalar_select 0, %s13, %s11
  $region1: #{_vae_forward.1} parent=0
    #allocation2 [shape = 'u8[8192]{0}', space=vmem, size = 0x2000, scoped, tag = 'input window, operand 0, single buffered']
    #allocation3 [shape = 's32[1]{0}', space=sflag, size = 0x4, scoped, tag = 'scoped memory for _vae_forward.1']
    #allocation4 [shape = 's32[1]{0}', space=sflag, size = 0x4, scoped, tag = 'scoped memory for _vae_forward.1']
    #allocation5 [shape = 'u8[65536]{0}', space=vmem, size = 0x10000, scoped, tag = 'input window, operand 1, single buffered']
    #allocation6 [shape = 's32[1]{0}', space=sflag, size = 0x4, scoped, tag = 'scoped memory for _vae_forward.1']
    #allocation7 [shape = 'u8[32768]{0}', space=vmem, size = 0x8000, scoped, tag = 'input window, operand 3, single buffered']
    #allocation8 [shape = 'u8[32768]{0}', space=vmem, size = 0x8000, scoped, tag = 'input window, operand 5, single buffered']
    #allocation9 [shape = 's32[1]{0}', space=sflag, size = 0x4, scoped, tag = 'scoped memory for _vae_forward.1']
    #allocation10 [shape = 'u8[4096]{0}', space=vmem, size = 0x1000, scoped, tag = 'input window, operand 7, single buffered']
    #allocation11 [shape = 'u8[8192]{0}', space=vmem, size = 0x2000, scoped, tag = 'output window, operand 1, single buffered']
    %15 = vsyncpa [#allocation3], 0
    %16 = vsyncpa [#allocation6], 0
    %17 = vsyncpa [#allocation9], 0
    %18 = vsyncpa [#allocation4], 0
    // Predicated region
    $region2: #{_vae_forward.1} parent=1 // pred_check
      _
    $region3: #{_vae_forward.1} parent=1 // pred_check_branch
      %20 = sbr.rel (0) target = $region5
    $region4: #{_vae_forward.1} parent=1 // pred_region
      %22 = vsyncadd [#allocation3], 0
      %s24 = sshll.u32 %s0, 4
      %s25 = int_to_ptr.hbm [resolvable:$true] %s24
      %s26 = sshll.u32 [#allocation2], 4
      %s27 = int_to_ptr.vmem [resolvable:$true] %s26
      %29 = dma.hbm_to_vmem [thread:$0]  %s25, 256, %s27, [#allocation3]
    $region5: #{_vae_forward.1} parent=1 // pred_fallthru
      _
    // Predicated region
    $region6: #{_vae_forward.1} parent=1 // pred_check
      _
    $region7: #{_vae_forward.1} parent=1 // pred_check_branch
      %31 = sbr.rel (0) target = $region9
    $region8: #{_vae_forward.1} parent=1 // pred_region
      %33 = vsyncadd [#allocation6], 0
      %s34 = sshll.u32 %s1, 4
      %s35 = int_to_ptr.hbm [resolvable:$true] %s34
      %s36 = sshll.u32 [#allocation5], 4
      %s37 = int_to_ptr.vmem [resolvable:$true] %s36
      %42 = dma.hbm_to_vmem [thread:$0]  %s35, 2048, %s37, [#allocation6], 64, 64, 4
    $region9: #{_vae_forward.1} parent=1 // pred_fallthru
      _
    // Predicated region
    $region10: #{_vae_forward.1} parent=1 // pred_check
      _
    $region11: #{_vae_forward.1} parent=1 // pred_check_branch
      %44 = sbr.rel (0) target = $region13
    $region12: #{_vae_forward.1} parent=1 // pred_region
      _
    $region13: #{_vae_forward.1} parent=1 // pred_fallthru
      _
    // Predicated region
    $region14: #{_vae_forward.1} parent=1 // pred_check
      _
    $region15: #{_vae_forward.1} parent=1 // pred_check_branch
      %46 = sbr.rel (0) target = $region17
    $region16: #{_vae_forward.1} parent=1 // pred_region
      %48 = vsyncadd [#allocation6], 0
      %s49 = sshll.u32 %s3, 4
      %s50 = int_to_ptr.hbm [resolvable:$true] %s49
      %s51 = sshll.u32 [#allocation7], 4
      %s52 = int_to_ptr.vmem [resolvable:$true] %s51
      %57 = dma.hbm_to_vmem [thread:$0]  %s50, 1024, %s52, [#allocation6], 64, 64, 4
    $region17: #{_vae_forward.1} parent=1 // pred_fallthru
      _
    // Predicated region
    $region18: #{_vae_forward.1} parent=1 // pred_check
      _
    $region19: #{_vae_forward.1} parent=1 // pred_check_branch
      %59 = sbr.rel (0) target = $region21
    $region20: #{_vae_forward.1} parent=1 // pred_region
      _
    $region21: #{_vae_forward.1} parent=1 // pred_fallthru
      _
    // Predicated region
    $region22: #{_vae_forward.1} parent=1 // pred_check
      _
    $region23: #{_vae_forward.1} parent=1 // pred_check_branch
      %61 = sbr.rel (0) target = $region25
    $region24: #{_vae_forward.1} parent=1 // pred_region
      %63 = vsyncadd [#allocation9], 0
      %s64 = sshll.u32 %s5, 4
      %s65 = int_to_ptr.hbm [resolvable:$true] %s64
      %s66 = sshll.u32 [#allocation8], 4
      %s67 = int_to_ptr.vmem [resolvable:$true] %s66
      %72 = dma.hbm_to_vmem [thread:$0]  %s65, 1024, %s67, [#allocation9], 128, 128, 8
    $region25: #{_vae_forward.1} parent=1 // pred_fallthru
      _
    // Predicated region
    $region26: #{_vae_forward.1} parent=1 // pred_check
      _
    $region27: #{_vae_forward.1} parent=1 // pred_check_branch
      %74 = sbr.rel (0) target = $region29
    $region28: #{_vae_forward.1} parent=1 // pred_region
      _
    $region29: #{_vae_forward.1} parent=1 // pred_fallthru
      _
    // Predicated region
    $region30: #{_vae_forward.1} parent=1 // pred_check
      _
    $region31: #{_vae_forward.1} parent=1 // pred_check_branch
      %76 = sbr.rel (0) target = $region33
    $region32: #{_vae_forward.1} parent=1 // pred_region
      %78 = vsyncadd [#allocation9], 0
      %s80 = sshll.u32 %s7, 4
      %s81 = int_to_ptr.hbm [resolvable:$true] %s80
      %s82 = sshll.u32 [#allocation10], 4
      %s83 = int_to_ptr.vmem [resolvable:$true] %s82
      %85 = dma.hbm_to_vmem [thread:$0]  %s81, 128, %s83, [#allocation9]
    $region33: #{_vae_forward.1} parent=1 // pred_fallthru
      _
    // Predicated region
    $region34: #{_vae_forward.1} parent=1 // pred_check
      _
    $region35: #{_vae_forward.1} parent=1 // pred_check_branch
      %87 = sbr.rel (0) target = $region37
    $region36: #{_vae_forward.1} parent=1 // pred_region
      %89 = dma.done [#allocation3], 256
    $region37: #{_vae_forward.1} parent=1 // pred_fallthru
      _
    // Predicated region
    $region38: #{_vae_forward.1} parent=1 // pred_check
      _
    $region39: #{_vae_forward.1} parent=1 // pred_check_branch
      %91 = sbr.rel (0) target = $region41
    $region40: #{_vae_forward.1} parent=1 // pred_region
      %93 = dma.done [#allocation6], 2048
    $region41: #{_vae_forward.1} parent=1 // pred_fallthru
      _
    // Predicated region
    $region42: #{_vae_forward.1} parent=1 // pred_check
      _
    $region43: #{_vae_forward.1} parent=1 // pred_check_branch
      %95 = sbr.rel (0) target = $region45
    $region44: #{_vae_forward.1} parent=1 // pred_region
      %97 = dma.done [#allocation6], 1024
    $region45: #{_vae_forward.1} parent=1 // pred_fallthru
      _
    // Predicated region
    $region46: #{_vae_forward.1} parent=1 // pred_check
      _
    $region47: #{_vae_forward.1} parent=1 // pred_check_branch
      %99 = sbr.rel (0) target = $region49
    $region48: #{_vae_forward.1} parent=1 // pred_region
      %101 = dma.done [#allocation9], 1024
    $region49: #{_vae_forward.1} parent=1 // pred_fallthru
      _
    // Predicated region
    $region50: #{_vae_forward.1} parent=1 // pred_check
      _
    $region51: #{_vae_forward.1} parent=1 // pred_check_branch
      %103 = sbr.rel (0) target = $region53
    $region52: #{_vae_forward.1} parent=1 // pred_region
      %105 = dma.done [#allocation9], 128
    $region53: #{_vae_forward.1} parent=1 // pred_fallthru
      _
    %v107 = vld [vmem:[#allocation2] sm:$0xff]
    %v108 = vld [vmem:[#allocation2 + $0x8] sm:$0xff]
    %v109 = vpack.c.bf16 %v107, %v107
    %v110 = vpack.c.bf16 %v108, %v108
    %v111 = vld [vmem:[#allocation5] sm:$0xf]
    %v112 = vld [vmem:[#allocation5 + $0x4] sm:$0xf]
    %v113 = vld [vmem:[#allocation5 + $0x8] sm:$0xf]
    %v114 = vld [vmem:[#allocation5 + $0xc] sm:$0xf]
    %v115 = vld [vmem:[#allocation5 + $0x10] sm:$0xf]
    %v116 = vld [vmem:[#allocation5 + $0x14] sm:$0xf]
    %v117 = vld [vmem:[#allocation5 + $0x18] sm:$0xf]
    %v118 = vld [vmem:[#allocation5 + $0x1c] sm:$0xf]
    %v119 = vld [vmem:[#allocation5 + $0x20] sm:$0xf]
    %v120 = vld [vmem:[#allocation5 + $0x24] sm:$0xf]
    %v121 = vld [vmem:[#allocation5 + $0x28] sm:$0xf]
    %v122 = vld [vmem:[#allocation5 + $0x2c] sm:$0xf]
    %v123 = vld [vmem:[#allocation5 + $0x30] sm:$0xf]
    %v124 = vld [vmem:[#allocation5 + $0x34] sm:$0xf]
    %v125 = vld [vmem:[#allocation5 + $0x38] sm:$0xf]
    %v126 = vld [vmem:[#allocation5 + $0x3c] sm:$0xf]
    %v127 = vld [vmem:[#allocation5 + $0x40] sm:$0xf]
    %v128 = vld [vmem:[#allocation5 + $0x44] sm:$0xf]
    %v129 = vld [vmem:[#allocation5 + $0x48] sm:$0xf]
    %v130 = vld [vmem:[#allocation5 + $0x4c] sm:$0xf]
    %v131 = vld [vmem:[#allocation5 + $0x50] sm:$0xf]
    %v132 = vld [vmem:[#allocation5 + $0x54] sm:$0xf]
    %v133 = vld [vmem:[#allocation5 + $0x58] sm:$0xf]
    %v134 = vld [vmem:[#allocation5 + $0x5c] sm:$0xf]
    %v135 = vld [vmem:[#allocation5 + $0x60] sm:$0xf]
    %v136 = vld [vmem:[#allocation5 + $0x64] sm:$0xf]
    %v137 = vld [vmem:[#allocation5 + $0x68] sm:$0xf]
    %v138 = vld [vmem:[#allocation5 + $0x6c] sm:$0xf]
    %v139 = vld [vmem:[#allocation5 + $0x70] sm:$0xf]
    %v140 = vld [vmem:[#allocation5 + $0x74] sm:$0xf]
    %v141 = vld [vmem:[#allocation5 + $0x78] sm:$0xf]
    %v142 = vld [vmem:[#allocation5 + $0x7c] sm:$0xf]
    %v143 = vld [vmem:[%s2] sm:$0x1]
    %v145 = vperm.slane %v143, 0
    %v179 = vunpack.c.l.b16 %v111
    %v180 = vunpack.c.l.b16 %v112
    %v181 = vunpack.c.l.b16 %v113
    %v182 = vunpack.c.l.b16 %v114
    %v183 = vunpack.c.l.b16 %v115
    %v184 = vunpack.c.l.b16 %v116
    %v185 = vunpack.c.l.b16 %v117
    %v186 = vunpack.c.l.b16 %v118
    %v187 = vunpack.c.l.b16 %v119
    %v188 = vunpack.c.l.b16 %v120
    %v189 = vunpack.c.l.b16 %v121
    %v190 = vunpack.c.l.b16 %v122
    %v191 = vunpack.c.l.b16 %v123
    %v192 = vunpack.c.l.b16 %v124
    %v193 = vunpack.c.l.b16 %v125
    %v194 = vunpack.c.l.b16 %v126
    %v195 = vunpack.c.l.b16 %v127
    %v196 = vunpack.c.l.b16 %v128
    %v197 = vunpack.c.l.b16 %v129
    %v198 = vunpack.c.l.b16 %v130
    %v199 = vunpack.c.l.b16 %v131
    %v200 = vunpack.c.l.b16 %v132
    %v201 = vunpack.c.l.b16 %v133
    %v202 = vunpack.c.l.b16 %v134
    %v203 = vunpack.c.l.b16 %v135
    %v204 = vunpack.c.l.b16 %v136
    %v205 = vunpack.c.l.b16 %v137
    %v206 = vunpack.c.l.b16 %v138
    %v207 = vunpack.c.l.b16 %v139
    %v208 = vunpack.c.l.b16 %v140
    %v209 = vunpack.c.l.b16 %v141
    %v210 = vunpack.c.l.b16 %v142
    %v211 = vpack.c.b16 %v180, %v179
    %v212 = vpack.c.b16 %v182, %v181
    %v213 = vpack.c.b16 %v184, %v183
    %v214 = vpack.c.b16 %v186, %v185
    %v215 = vpack.c.b16 %v188, %v187
    %v216 = vpack.c.b16 %v190, %v189
    %v217 = vpack.c.b16 %v192, %v191
    %v218 = vpack.c.b16 %v194, %v193
    %v219 = vpack.c.b16 %v196, %v195
    %v220 = vpack.c.b16 %v198, %v197
    %v221 = vpack.c.b16 %v200, %v199
    %v222 = vpack.c.b16 %v202, %v201
    %v223 = vpack.c.b16 %v204, %v203
    %v224 = vpack.c.b16 %v206, %v205
    %v225 = vpack.c.b16 %v208, %v207
    %v226 = vpack.c.b16 %v210, %v209
    %243 = vmatpush.bf16.msra.mxu0 %v218
    %244 = vmatpush.bf16.msra.mxu0 %v217
    %245 = vmatpush.bf16.msra.mxu0 %v216
    %246 = vmatpush.bf16.msra.mxu0 %v215
    %247 = vmatpush.bf16.msra.mxu0 %v214
    %248 = vmatpush.bf16.msra.mxu0 %v213
    %249 = vmatpush.bf16.msra.mxu0 %v212
    %250 = vmatpush.bf16.msra.mxu0 %v211
    %251 = vmatmul.bf16.gmra.mxu0 %v109
    %v252 = vpop.f32.mrf.mxu0
    %v253 = vadd.f32 %v145, %v252
    %v254 = vpop.f32.mrf.mxu0
    %255 = vdwg.mxu0
    %256 = vmatpush.bf16.msra.mxu0 %v226
    %257 = vmatpush.bf16.msra.mxu0 %v225
    %258 = vmatpush.bf16.msra.mxu0 %v224
    %259 = vmatpush.bf16.msra.mxu0 %v223
    %260 = vmatpush.bf16.msra.mxu0 %v222
    %261 = vmatpush.bf16.msra.mxu0 %v221
    %262 = vmatpush.bf16.msra.mxu0 %v220
    %263 = vmatpush.bf16.msra.mxu0 %v219
    %264 = vmatmul.bf16.gmra.mxu0 %v110
    %v265 = vpop.f32.mrf.mxu0
    %v266 = vadd.f32 %v253, %v265
    %v267 = vpop.f32.mrf.mxu0
    %268 = vdwg.mxu0
    %v269 = vmax.f32 %v266, 0.0
    %v270 = vpack.c.bf16 %v269, %v269
    %v271 = vld [vmem:[#allocation7] sm:$0xf]
    %v272 = vld [vmem:[#allocation7 + $0x4] sm:$0xf]
    %v273 = vld [vmem:[#allocation7 + $0x8] sm:$0xf]
    %v274 = vld [vmem:[#allocation7 + $0xc] sm:$0xf]
    %v275 = vld [vmem:[#allocation7 + $0x10] sm:$0xf]
    %v276 = vld [vmem:[#allocation7 + $0x14] sm:$0xf]
    %v277 = vld [vmem:[#allocation7 + $0x18] sm:$0xf]
    %v278 = vld [vmem:[#allocation7 + $0x1c] sm:$0xf]
    %v279 = vld [vmem:[#allocation7 + $0x20] sm:$0xf]
    %v280 = vld [vmem:[#allocation7 + $0x24] sm:$0xf]
    %v281 = vld [vmem:[#allocation7 + $0x28] sm:$0xf]
    %v282 = vld [vmem:[#allocation7 + $0x2c] sm:$0xf]
    %v283 = vld [vmem:[#allocation7 + $0x30] sm:$0xf]
    %v284 = vld [vmem:[#allocation7 + $0x34] sm:$0xf]
    %v285 = vld [vmem:[#allocation7 + $0x38] sm:$0xf]
    %v286 = vld [vmem:[#allocation7 + $0x3c] sm:$0xf]
    %v287 = vld [vmem:[%s4] sm:$0x1]
    %v289 = vperm.slane %v287, 0
    %v307 = vunpack.c.l.b16 %v271
    %v308 = vunpack.c.l.b16 %v272
    %v309 = vunpack.c.l.b16 %v273
    %v310 = vunpack.c.l.b16 %v274
    %v311 = vunpack.c.l.b16 %v275
    %v312 = vunpack.c.l.b16 %v276
    %v313 = vunpack.c.l.b16 %v277
    %v314 = vunpack.c.l.b16 %v278
    %v315 = vunpack.c.l.b16 %v279
    %v316 = vunpack.c.l.b16 %v280
    %v317 = vunpack.c.l.b16 %v281
    %v318 = vunpack.c.l.b16 %v282
    %v319 = vunpack.c.l.b16 %v283
    %v320 = vunpack.c.l.b16 %v284
    %v321 = vunpack.c.l.b16 %v285
    %v322 = vunpack.c.l.b16 %v286
    %v323 = vpack.c.b16 %v308, %v307
    %v324 = vpack.c.b16 %v310, %v309
    %v325 = vpack.c.b16 %v312, %v311
    %v326 = vpack.c.b16 %v314, %v313
    %v327 = vpack.c.b16 %v316, %v315
    %v328 = vpack.c.b16 %v318, %v317
    %v329 = vpack.c.b16 %v320, %v319
    %v330 = vpack.c.b16 %v322, %v321
    %339 = vmatpush.bf16.msra.mxu0 %v330
    %340 = vmatpush.bf16.msra.mxu0 %v329
    %341 = vmatpush.bf16.msra.mxu0 %v328
    %342 = vmatpush.bf16.msra.mxu0 %v327
    %343 = vmatpush.bf16.msra.mxu0 %v326
    %344 = vmatpush.bf16.msra.mxu0 %v325
    %345 = vmatpush.bf16.msra.mxu0 %v324
    %346 = vmatpush.bf16.msra.mxu0 %v323
    %347 = vmatmul.bf16.gmra.mxu0 %v270
    %v348 = vpop.f32.mrf.mxu0
    %v349 = vadd.f32 %v289, %v348
    %v350 = vpop.f32.mrf.mxu0
    %351 = vdwg.mxu0
    %v352 = vmul.f32 %v349, 0.5
    %v353 = vmul.f32 %v352, 1.442695
    %v354 = vpow.pop %v353
    %v355 = vld [vmem:[#allocation10] sm:$0xff]
    %357 = vrot.lane.b32.xlu0 %v355, 64
    %v358 = vpop.permute.xlu0 %357
    %v360 = vmul.f32 %v354, %v358
    %362 = vrot.lane.b32.xlu0 %v360, 64
    %v363 = vpop.permute.xlu0 %362
    %v365 = vadd.f32 %v349, %v363
    %v366 = vpack.c.bf16 %v365, %v365
    %v367 = vld [vmem:[#allocation8] sm:$0xff]
    %v368 = vld [vmem:[#allocation8 + $0x8] sm:$0xff]
    %v369 = vld [vmem:[#allocation8 + $0x10] sm:$0xff]
    %v370 = vld [vmem:[#allocation8 + $0x18] sm:$0xff]
    %v371 = vld [vmem:[#allocation8 + $0x20] sm:$0xff]
    %v372 = vld [vmem:[#allocation8 + $0x28] sm:$0xff]
    %v373 = vld [vmem:[#allocation8 + $0x30] sm:$0xff]
    %v374 = vld [vmem:[#allocation8 + $0x38] sm:$0xff]
    %v375 = vld [vmem:[%s6] sm:$0x3]
    %v377 = vperm.slane %v375, 0
    %v378 = vperm.slane %v375, 1
    %v389 = vunpack.c.l.b16 %v367
    %v390 = vunpack.c.h.b16 %v367
    %v391 = vunpack.c.l.b16 %v368
    %v392 = vunpack.c.h.b16 %v368
    %v393 = vunpack.c.l.b16 %v369
    %v394 = vunpack.c.h.b16 %v369
    %v395 = vunpack.c.l.b16 %v370
    %v396 = vunpack.c.h.b16 %v370
    %v397 = vunpack.c.l.b16 %v371
    %v398 = vunpack.c.h.b16 %v371
    %v399 = vunpack.c.l.b16 %v372
    %v400 = vunpack.c.h.b16 %v372
    %v401 = vunpack.c.l.b16 %v373
    %v402 = vunpack.c.h.b16 %v373
    %v403 = vunpack.c.l.b16 %v374
    %v404 = vunpack.c.h.b16 %v374
    %v405 = vpack.c.b16 %v391, %v389
    %v406 = vpack.c.b16 %v392, %v390
    %v407 = vpack.c.b16 %v395, %v393
    %v408 = vpack.c.b16 %v396, %v394
    %v409 = vpack.c.b16 %v399, %v397
    %v410 = vpack.c.b16 %v400, %v398
    %v411 = vpack.c.b16 %v403, %v401
    %v412 = vpack.c.b16 %v404, %v402
    %vm421 = vcmask 523264
    %v423 = vsel %vm421, %v366, 0
    %425 = vmatpush.bf16.msra.mxu0 0
    %426 = vmatpush.bf16.msra.mxu0 0
    %427 = vmatpush.bf16.msra.mxu0 0
    %428 = vmatpush.bf16.msra.mxu0 0
    %429 = vmatpush.bf16.msra.mxu0 %v411
    %430 = vmatpush.bf16.msra.mxu0 %v409
    %431 = vmatpush.bf16.msra.mxu0 %v407
    %432 = vmatpush.bf16.msra.mxu0 %v405
    %433 = vmatmul.bf16.gmra.mxu0 %v423
    %v434 = vpop.f32.mrf.mxu0
    %v435 = vadd.f32 %v377, %v434
    %v436 = vpop.f32.mrf.mxu0
    %437 = vdwg.mxu0
    %438 = vmatpush.bf16.msra.mxu0 0
    %439 = vmatpush.bf16.msra.mxu0 0
    %440 = vmatpush.bf16.msra.mxu0 0
    %441 = vmatpush.bf16.msra.mxu0 0
    %442 = vmatpush.bf16.msra.mxu0 %v412
    %443 = vmatpush.bf16.msra.mxu0 %v410
    %444 = vmatpush.bf16.msra.mxu0 %v408
    %445 = vmatpush.bf16.msra.mxu0 %v406
    %446 = vmatmul.bf16.gmra.mxu0 %v423
    %v447 = vpop.f32.mrf.mxu0
    %v448 = vadd.f32 %v378, %v447
    %v449 = vpop.f32.mrf.mxu0
    %450 = vdwg.mxu0
    %v451 = vxor.u32 %v435, 2147483648
    %v452 = vxor.u32 %v448, 2147483648
    %v453 = vmul.f32 %v451, 1.442695
    %v454 = vpow.pop %v453
    %v455 = vmul.f32 %v452, 1.442695
    %v456 = vpow.pop %v455
    %v457 = vadd.f32 %v454, 1.0
    %v458 = vadd.f32 %v456, 1.0
    %v459 = vrcp.pop %v457
    %v460 = vmul.f32 %v457, %v459
    %v461 = vsub.f32 1.0, %v460
    %v462 = vmul.f32 %v459, %v461
    %v463 = vadd.f32 %v459, %v462
    %vm464 = vweird.f32 %v457
    %vm465 = vweird.f32 %v459
    %vm466 = vmor %vm464, %vm465
    %v467 = vsel %vm466, %v459, %v463
    %v468 = vand.u32 2147483647, %v457
    %vm469 = vcmp.eq.f32.partialorder %v468, 8.507059e+37
    %v470 = vand.u32 %v457, 2147483648
    %v471 = vor.u32 1.1754944e-38, %v470
    %v472 = vsel %vm469, %v471, %v467
    %v473 = vmul.f32 1.0, %v472
    %v474 = vrcp.pop %v458
    %v475 = vmul.f32 %v458, %v474
    %v476 = vsub.f32 1.0, %v475
    %v477 = vmul.f32 %v474, %v476
    %v478 = vadd.f32 %v474, %v477
    %vm479 = vweird.f32 %v458
    %vm480 = vweird.f32 %v474
    %vm481 = vmor %vm479, %vm480
    %v482 = vsel %vm481, %v474, %v478
    %v483 = vand.u32 2147483647, %v458
    %vm484 = vcmp.eq.f32.partialorder %v483, 8.507059e+37
    %v485 = vand.u32 %v458, 2147483648
    %v486 = vor.u32 1.1754944e-38, %v485
    %v487 = vsel %vm484, %v486, %v482
    %v488 = vmul.f32 1.0, %v487
    %489 = vst [vmem:[#allocation11] sm:$0xff] %v473
    %490 = vst [vmem:[#allocation11 + $0x8] sm:$0xff] %v488
    %491 = vst [vmem:[%s8] sm:$0xff] %v349
    %492 = vst.msk [vmem:[%s8 + $0x8] sm:$0xff] %vm421, %v365
    // Predicated region
    $region54: #{_vae_forward.1} parent=1 // pred_check
      _
    $region55: #{_vae_forward.1} parent=1 // pred_check_branch
      %494 = sbr.rel (0) target = $region57
    $region56: #{_vae_forward.1} parent=1 // pred_region
      _
    $region57: #{_vae_forward.1} parent=1 // pred_fallthru
      _
    // Predicated region
    $region58: #{_vae_forward.1} parent=1 // pred_check
      _
    $region59: #{_vae_forward.1} parent=1 // pred_check_branch
      %496 = sbr.rel (0) target = $region61
    $region60: #{_vae_forward.1} parent=1 // pred_region
      %498 = vsyncadd [#allocation4], 0
      %s500 = sshll.u32 [#allocation11], 4
      %s501 = int_to_ptr.vmem [resolvable:$true] %s500
      %s502 = sshll.u32 %s9, 4
      %s503 = int_to_ptr.hbm [resolvable:$true] %s502
      %505 = dma.vmem_to_hbm [thread:$0]  %s501, 256, %s503, [#allocation4]
    $region61: #{_vae_forward.1} parent=1 // pred_fallthru
      _
    // Predicated region
    $region62: #{_vae_forward.1} parent=1 // pred_check
      _
    $region63: #{_vae_forward.1} parent=1 // pred_check_branch
      %507 = sbr.rel (0) target = $region65
    $region64: #{_vae_forward.1} parent=1 // pred_region
      _
    $region65: #{_vae_forward.1} parent=1 // pred_fallthru
      _
    // Predicated region
    $region66: #{_vae_forward.1} parent=1 // pred_check
      _
    $region67: #{_vae_forward.1} parent=1 // pred_check_branch
      %509 = sbr.rel (0) target = $region69
    $region68: #{_vae_forward.1} parent=1 // pred_region
      %511 = dma.done [#allocation4], 256
    $region69: #{_vae_forward.1} parent=1 // pred_fallthru
      _
    %512 = vsyncpa [#allocation3], 1
    %513 = vsyncpa [#allocation6], 1
    %514 = vsyncpa [#allocation9], 1
    %515 = vsyncpa [#allocation4], 1

// kernel: _vae_forward.1
$region0: #{_vae_forward.1}
  #allocation0 [shape = 'u32[]', space=smem, size = 0x4, offset = 0x4, fixed_abs, tag = 'smem constant byte address 0x4 - core index']
  #allocation1 [shape = 'u32[72,128]{1,0:T(1,128)}', space=vmem, size = 0x9000, scoped, tag = 'internal scratch']
  %s0 = inlined_call_operand.hbm [shape: f32[8,256], index: 0, kind: input, shape index: {}]
  %s1 = inlined_call_operand.hbm [shape: bf16[256,128], index: 1, kind: input, shape index: {}]
  %s2 = inlined_call_operand.vmem [shape: f32[1,128], index: 2, kind: input, shape index: {}]
  %s3 = inlined_call_operand.hbm [shape: bf16[128,128], index: 3, kind: input, shape index: {}]
  %s4 = inlined_call_operand.vmem [shape: f32[1,128], index: 4, kind: input, shape index: {}]
  %s5 = inlined_call_operand.hbm [shape: bf16[64,256], index: 5, kind: input, shape index: {}]
  %s6 = inlined_call_operand.vmem [shape: f32[1,256], index: 6, kind: input, shape index: {}]
  %s7 = inlined_call_operand.hbm [shape: f32[8,64], index: 7, kind: input, shape index: {}]
  %s8 = inlined_call_operand.vmem [shape: f32[8,192], index: 8, kind: output, shape index: {0}]
  %s9 = inlined_call_operand.hbm [shape: f32[8,256], index: 9, kind: output, shape index: {1}]
  %10 = xla_tuple %s8, %s9
  %s11 = sld [smem:[#allocation0]]
  $region70: #{_vae_forward.1} parent=0
    _
  %s13 = ssub.s32 1, %s11
  %s14 = scalar_select 0, %s13, %s11
  $region1: #{_vae_forward.1} parent=0
    #allocation2 [shape = 'u8[8192]{0}', space=vmem, size = 0x2000, scoped, tag = 'input window, operand 0, single buffered']
    #allocation3 [shape = 's32[1]{0}', space=sflag, size = 0x4, scoped, tag = 'scoped memory for _vae_forward.1']
    #allocation4 [shape = 's32[1]{0}', space=sflag, size = 0x4, scoped, tag = 'scoped memory for _vae_forward.1']
    #allocation5 [shape = 'u8[65536]{0}', space=vmem, size = 0x10000, scoped, tag = 'input window, operand 1, single buffered']
    #allocation6 [shape = 's32[1]{0}', space=sflag, size = 0x4, scoped, tag = 'scoped memory for _vae_forward.1']
    #allocation7 [shape = 'u8[32768]{0}', space=vmem, size = 0x8000, scoped, tag = 'input window, operand 3, single buffered']
    #allocation8 [shape = 'u8[32768]{0}', space=vmem, size = 0x8000, scoped, tag = 'input window, operand 5, single buffered']
    #allocation9 [shape = 's32[1]{0}', space=sflag, size = 0x4, scoped, tag = 'scoped memory for _vae_forward.1']
    #allocation10 [shape = 'u8[4096]{0}', space=vmem, size = 0x1000, scoped, tag = 'input window, operand 7, single buffered']
    #allocation11 [shape = 'u8[8192]{0}', space=vmem, size = 0x2000, scoped, tag = 'output window, operand 1, single buffered']
    %15 = vsyncpa [#allocation3], 0
    %16 = vsyncpa [#allocation6], 0
    %17 = vsyncpa [#allocation9], 0
    %18 = vsyncpa [#allocation4], 0
    // Predicated region
    $region2: #{_vae_forward.1} parent=1 // pred_check
      _
    $region3: #{_vae_forward.1} parent=1 // pred_check_branch
      %20 = sbr.rel (0) target = $region5
    $region4: #{_vae_forward.1} parent=1 // pred_region
      %22 = vsyncadd [#allocation3], 0
      %s24 = sshll.u32 %s0, 4
      %s25 = int_to_ptr.hbm [resolvable:$true] %s24
      %s26 = sshll.u32 [#allocation2], 4
      %s27 = int_to_ptr.vmem [resolvable:$true] %s26
      %29 = dma.hbm_to_vmem [thread:$0]  %s25, 256, %s27, [#allocation3]
    $region5: #{_vae_forward.1} parent=1 // pred_fallthru
      _
    // Predicated region
    $region6: #{_vae_forward.1} parent=1 // pred_check
      _
    $region7: #{_vae_forward.1} parent=1 // pred_check_branch
      %31 = sbr.rel (0) target = $region9
    $region8: #{_vae_forward.1} parent=1 // pred_region
      %33 = vsyncadd [#allocation6], 0
      %s34 = sshll.u32 %s1, 4
      %s35 = int_to_ptr.hbm [resolvable:$true] %s34
      %s36 = sshll.u32 [#allocation5], 4
      %s37 = int_to_ptr.vmem [resolvable:$true] %s36
      %42 = dma.hbm_to_vmem [thread:$0]  %s35, 2048, %s37, [#allocation6], 64, 64, 4
    $region9: #{_vae_forward.1} parent=1 // pred_fallthru
      _
    // Predicated region
    $region10: #{_vae_forward.1} parent=1 // pred_check
      _
    $region11: #{_vae_forward.1} parent=1 // pred_check_branch
      %44 = sbr.rel (0) target = $region13
    $region12: #{_vae_forward.1} parent=1 // pred_region
      _
    $region13: #{_vae_forward.1} parent=1 // pred_fallthru
      _
    // Predicated region
    $region14: #{_vae_forward.1} parent=1 // pred_check
      _
    $region15: #{_vae_forward.1} parent=1 // pred_check_branch
      %46 = sbr.rel (0) target = $region17
    $region16: #{_vae_forward.1} parent=1 // pred_region
      %48 = vsyncadd [#allocation6], 0
      %s49 = sshll.u32 %s3, 4
      %s50 = int_to_ptr.hbm [resolvable:$true] %s49
      %s51 = sshll.u32 [#allocation7], 4
      %s52 = int_to_ptr.vmem [resolvable:$true] %s51
      %57 = dma.hbm_to_vmem [thread:$0]  %s50, 1024, %s52, [#allocation6], 64, 64, 4
    $region17: #{_vae_forward.1} parent=1 // pred_fallthru
      _
    // Predicated region
    $region18: #{_vae_forward.1} parent=1 // pred_check
      _
    $region19: #{_vae_forward.1} parent=1 // pred_check_branch
      %59 = sbr.rel (0) target = $region21
    $region20: #{_vae_forward.1} parent=1 // pred_region
      _
    $region21: #{_vae_forward.1} parent=1 // pred_fallthru
      _
    // Predicated region
    $region22: #{_vae_forward.1} parent=1 // pred_check
      _
    $region23: #{_vae_forward.1} parent=1 // pred_check_branch
      %61 = sbr.rel (0) target = $region25
    $region24: #{_vae_forward.1} parent=1 // pred_region
      %63 = vsyncadd [#allocation9], 0
      %s64 = sshll.u32 %s5, 4
      %s65 = int_to_ptr.hbm [resolvable:$true] %s64
      %s66 = sshll.u32 [#allocation8], 4
      %s67 = int_to_ptr.vmem [resolvable:$true] %s66
      %72 = dma.hbm_to_vmem [thread:$0]  %s65, 1024, %s67, [#allocation9], 128, 128, 8
    $region25: #{_vae_forward.1} parent=1 // pred_fallthru
      _
    // Predicated region
    $region26: #{_vae_forward.1} parent=1 // pred_check
      _
    $region27: #{_vae_forward.1} parent=1 // pred_check_branch
      %74 = sbr.rel (0) target = $region29
    $region28: #{_vae_forward.1} parent=1 // pred_region
      _
    $region29: #{_vae_forward.1} parent=1 // pred_fallthru
      _
    // Predicated region
    $region30: #{_vae_forward.1} parent=1 // pred_check
      _
    $region31: #{_vae_forward.1} parent=1 // pred_check_branch
      %76 = sbr.rel (0) target = $region33
    $region32: #{_vae_forward.1} parent=1 // pred_region
      %78 = vsyncadd [#allocation9], 0
      %s80 = sshll.u32 %s7, 4
      %s81 = int_to_ptr.hbm [resolvable:$true] %s80
      %s82 = sshll.u32 [#allocation10], 4
      %s83 = int_to_ptr.vmem [resolvable:$true] %s82
      %85 = dma.hbm_to_vmem [thread:$0]  %s81, 128, %s83, [#allocation9]
    $region33: #{_vae_forward.1} parent=1 // pred_fallthru
      _
    // Predicated region
    $region34: #{_vae_forward.1} parent=1 // pred_check
      _
    $region35: #{_vae_forward.1} parent=1 // pred_check_branch
      %87 = sbr.rel (0) target = $region37
    $region36: #{_vae_forward.1} parent=1 // pred_region
      %89 = dma.done [#allocation3], 256
    $region37: #{_vae_forward.1} parent=1 // pred_fallthru
      _
    // Predicated region
    $region38: #{_vae_forward.1} parent=1 // pred_check
      _
    $region39: #{_vae_forward.1} parent=1 // pred_check_branch
      %91 = sbr.rel (0) target = $region41
    $region40: #{_vae_forward.1} parent=1 // pred_region
      %93 = dma.done [#allocation6], 2048
    $region41: #{_vae_forward.1} parent=1 // pred_fallthru
      _
    // Predicated region
    $region42: #{_vae_forward.1} parent=1 // pred_check
      _
    $region43: #{_vae_forward.1} parent=1 // pred_check_branch
      %95 = sbr.rel (0) target = $region45
    $region44: #{_vae_forward.1} parent=1 // pred_region
      %97 = dma.done [#allocation6], 1024
    $region45: #{_vae_forward.1} parent=1 // pred_fallthru
      _
    // Predicated region
    $region46: #{_vae_forward.1} parent=1 // pred_check
      _
    $region47: #{_vae_forward.1} parent=1 // pred_check_branch
      %99 = sbr.rel (0) target = $region49
    $region48: #{_vae_forward.1} parent=1 // pred_region
      %101 = dma.done [#allocation9], 1024
    $region49: #{_vae_forward.1} parent=1 // pred_fallthru
      _
    // Predicated region
    $region50: #{_vae_forward.1} parent=1 // pred_check
      _
    $region51: #{_vae_forward.1} parent=1 // pred_check_branch
      %103 = sbr.rel (0) target = $region53
    $region52: #{_vae_forward.1} parent=1 // pred_region
      %105 = dma.done [#allocation9], 128
    $region53: #{_vae_forward.1} parent=1 // pred_fallthru
      _
    %v107 = vld [vmem:[#allocation2] sm:$0xff]
    %v108 = vld [vmem:[#allocation2 + $0x8] sm:$0xff]
    %v109 = vpack.c.bf16 %v107, %v107
    %v110 = vpack.c.bf16 %v108, %v108
    %v111 = vld [vmem:[#allocation5] sm:$0xf]
    %v112 = vld [vmem:[#allocation5 + $0x4] sm:$0xf]
    %v113 = vld [vmem:[#allocation5 + $0x8] sm:$0xf]
    %v114 = vld [vmem:[#allocation5 + $0xc] sm:$0xf]
    %v115 = vld [vmem:[#allocation5 + $0x10] sm:$0xf]
    %v116 = vld [vmem:[#allocation5 + $0x14] sm:$0xf]
    %v117 = vld [vmem:[#allocation5 + $0x18] sm:$0xf]
    %v118 = vld [vmem:[#allocation5 + $0x1c] sm:$0xf]
    %v119 = vld [vmem:[#allocation5 + $0x20] sm:$0xf]
    %v120 = vld [vmem:[#allocation5 + $0x24] sm:$0xf]
    %v121 = vld [vmem:[#allocation5 + $0x28] sm:$0xf]
    %v122 = vld [vmem:[#allocation5 + $0x2c] sm:$0xf]
    %v123 = vld [vmem:[#allocation5 + $0x30] sm:$0xf]
    %v124 = vld [vmem:[#allocation5 + $0x34] sm:$0xf]
    %v125 = vld [vmem:[#allocation5 + $0x38] sm:$0xf]
    %v126 = vld [vmem:[#allocation5 + $0x3c] sm:$0xf]
    %v127 = vld [vmem:[#allocation5 + $0x40] sm:$0xf]
    %v128 = vld [vmem:[#allocation5 + $0x44] sm:$0xf]
    %v129 = vld [vmem:[#allocation5 + $0x48] sm:$0xf]
    %v130 = vld [vmem:[#allocation5 + $0x4c] sm:$0xf]
    %v131 = vld [vmem:[#allocation5 + $0x50] sm:$0xf]
    %v132 = vld [vmem:[#allocation5 + $0x54] sm:$0xf]
    %v133 = vld [vmem:[#allocation5 + $0x58] sm:$0xf]
    %v134 = vld [vmem:[#allocation5 + $0x5c] sm:$0xf]
    %v135 = vld [vmem:[#allocation5 + $0x60] sm:$0xf]
    %v136 = vld [vmem:[#allocation5 + $0x64] sm:$0xf]
    %v137 = vld [vmem:[#allocation5 + $0x68] sm:$0xf]
    %v138 = vld [vmem:[#allocation5 + $0x6c] sm:$0xf]
    %v139 = vld [vmem:[#allocation5 + $0x70] sm:$0xf]
    %v140 = vld [vmem:[#allocation5 + $0x74] sm:$0xf]
    %v141 = vld [vmem:[#allocation5 + $0x78] sm:$0xf]
    %v142 = vld [vmem:[#allocation5 + $0x7c] sm:$0xf]
    %v143 = vld [vmem:[%s2] sm:$0x1]
    %v145 = vperm.slane %v143, 0
    %v179 = vunpack.c.l.b16 %v111
    %v180 = vunpack.c.l.b16 %v112
    %v181 = vunpack.c.l.b16 %v113
    %v182 = vunpack.c.l.b16 %v114
    %v183 = vunpack.c.l.b16 %v115
    %v184 = vunpack.c.l.b16 %v116
    %v185 = vunpack.c.l.b16 %v117
    %v186 = vunpack.c.l.b16 %v118
    %v187 = vunpack.c.l.b16 %v119
    %v188 = vunpack.c.l.b16 %v120
    %v189 = vunpack.c.l.b16 %v121
    %v190 = vunpack.c.l.b16 %v122
    %v191 = vunpack.c.l.b16 %v123
    %v192 = vunpack.c.l.b16 %v124
    %v193 = vunpack.c.l.b16 %v125
    %v194 = vunpack.c.l.b16 %v126
    %v195 = vunpack.c.l.b16 %v127
    %v196 = vunpack.c.l.b16 %v128
    %v197 = vunpack.c.l.b16 %v129
    %v198 = vunpack.c.l.b16 %v130
    %v199 = vunpack.c.l.b16 %v131
    %v200 = vunpack.c.l.b16 %v132
    %v201 = vunpack.c.l.b16 %v133
    %v202 = vunpack.c.l.b16 %v134
    %v203 = vunpack.c.l.b16 %v135
    %v204 = vunpack.c.l.b16 %v136
    %v205 = vunpack.c.l.b16 %v137
    %v206 = vunpack.c.l.b16 %v138
    %v207 = vunpack.c.l.b16 %v139
    %v208 = vunpack.c.l.b16 %v140
    %v209 = vunpack.c.l.b16 %v141
    %v210 = vunpack.c.l.b16 %v142
    %v211 = vpack.c.b16 %v180, %v179
    %v212 = vpack.c.b16 %v182, %v181
    %v213 = vpack.c.b16 %v184, %v183
    %v214 = vpack.c.b16 %v186, %v185
    %v215 = vpack.c.b16 %v188, %v187
    %v216 = vpack.c.b16 %v190, %v189
    %v217 = vpack.c.b16 %v192, %v191
    %v218 = vpack.c.b16 %v194, %v193
    %v219 = vpack.c.b16 %v196, %v195
    %v220 = vpack.c.b16 %v198, %v197
    %v221 = vpack.c.b16 %v200, %v199
    %v222 = vpack.c.b16 %v202, %v201
    %v223 = vpack.c.b16 %v204, %v203
    %v224 = vpack.c.b16 %v206, %v205
    %v225 = vpack.c.b16 %v208, %v207
    %v226 = vpack.c.b16 %v210, %v209
    %243 = vmatpush.bf16.msra.mxu0 %v218
    %244 = vmatpush.bf16.msra.mxu0 %v217
    %245 = vmatpush.bf16.msra.mxu0 %v216
    %246 = vmatpush.bf16.msra.mxu0 %v215
    %247 = vmatpush.bf16.msra.mxu0 %v214
    %248 = vmatpush.bf16.msra.mxu0 %v213
    %249 = vmatpush.bf16.msra.mxu0 %v212
    %250 = vmatpush.bf16.msra.mxu0 %v211
    %251 = vmatmul.bf16.gmra.mxu0 %v109
    %v252 = vpop.f32.mrf.mxu0
    %v253 = vadd.f32 %v145, %v252
    %v254 = vpop.f32.mrf.mxu0
    %255 = vdwg.mxu0
    %256 = vmatpush.bf16.msra.mxu0 %v226
    %257 = vmatpush.bf16.msra.mxu0 %v225
    %258 = vmatpush.bf16.msra.mxu0 %v224
    %259 = vmatpush.bf16.msra.mxu0 %v223
    %260 = vmatpush.bf16.msra.mxu0 %v222
    %261 = vmatpush.bf16.msra.mxu0 %v221
    %262 = vmatpush.bf16.msra.mxu0 %v220
    %263 = vmatpush.bf16.msra.mxu0 %v219
    %264 = vmatmul.bf16.gmra.mxu0 %v110
    %v265 = vpop.f32.mrf.mxu0
    %v266 = vadd.f32 %v253, %v265
    %v267 = vpop.f32.mrf.mxu0
    %268 = vdwg.mxu0
    %v269 = vmax.f32 %v266, 0.0
    %v270 = vpack.c.bf16 %v269, %v269
    %v271 = vld [vmem:[#allocation7] sm:$0xf]
    %v272 = vld [vmem:[#allocation7 + $0x4] sm:$0xf]
    %v273 = vld [vmem:[#allocation7 + $0x8] sm:$0xf]
    %v274 = vld [vmem:[#allocation7 + $0xc] sm:$0xf]
    %v275 = vld [vmem:[#allocation7 + $0x10] sm:$0xf]
    %v276 = vld [vmem:[#allocation7 + $0x14] sm:$0xf]
    %v277 = vld [vmem:[#allocation7 + $0x18] sm:$0xf]
    %v278 = vld [vmem:[#allocation7 + $0x1c] sm:$0xf]
    %v279 = vld [vmem:[#allocation7 + $0x20] sm:$0xf]
    %v280 = vld [vmem:[#allocation7 + $0x24] sm:$0xf]
    %v281 = vld [vmem:[#allocation7 + $0x28] sm:$0xf]
    %v282 = vld [vmem:[#allocation7 + $0x2c] sm:$0xf]
    %v283 = vld [vmem:[#allocation7 + $0x30] sm:$0xf]
    %v284 = vld [vmem:[#allocation7 + $0x34] sm:$0xf]
    %v285 = vld [vmem:[#allocation7 + $0x38] sm:$0xf]
    %v286 = vld [vmem:[#allocation7 + $0x3c] sm:$0xf]
    %v287 = vld [vmem:[%s4] sm:$0x1]
    %v289 = vperm.slane %v287, 0
    %v307 = vunpack.c.l.b16 %v271
    %v308 = vunpack.c.l.b16 %v272
    %v309 = vunpack.c.l.b16 %v273
    %v310 = vunpack.c.l.b16 %v274
    %v311 = vunpack.c.l.b16 %v275
    %v312 = vunpack.c.l.b16 %v276
    %v313 = vunpack.c.l.b16 %v277
    %v314 = vunpack.c.l.b16 %v278
    %v315 = vunpack.c.l.b16 %v279
    %v316 = vunpack.c.l.b16 %v280
    %v317 = vunpack.c.l.b16 %v281
    %v318 = vunpack.c.l.b16 %v282
    %v319 = vunpack.c.l.b16 %v283
    %v320 = vunpack.c.l.b16 %v284
    %v321 = vunpack.c.l.b16 %v285
    %v322 = vunpack.c.l.b16 %v286
    %v323 = vpack.c.b16 %v308, %v307
    %v324 = vpack.c.b16 %v310, %v309
    %v325 = vpack.c.b16 %v312, %v311
    %v326 = vpack.c.b16 %v314, %v313
    %v327 = vpack.c.b16 %v316, %v315
    %v328 = vpack.c.b16 %v318, %v317
    %v329 = vpack.c.b16 %v320, %v319
    %v330 = vpack.c.b16 %v322, %v321
    %339 = vmatpush.bf16.msra.mxu0 %v330
    %340 = vmatpush.bf16.msra.mxu0 %v329
    %341 = vmatpush.bf16.msra.mxu0 %v328
    %342 = vmatpush.bf16.msra.mxu0 %v327
    %343 = vmatpush.bf16.msra.mxu0 %v326
    %344 = vmatpush.bf16.msra.mxu0 %v325
    %345 = vmatpush.bf16.msra.mxu0 %v324
    %346 = vmatpush.bf16.msra.mxu0 %v323
    %347 = vmatmul.bf16.gmra.mxu0 %v270
    %v348 = vpop.f32.mrf.mxu0
    %v349 = vadd.f32 %v289, %v348
    %v350 = vpop.f32.mrf.mxu0
    %351 = vdwg.mxu0
    %v352 = vmul.f32 %v349, 0.5
    %v353 = vmul.f32 %v352, 1.442695
    %v354 = vpow.pop %v353
    %v355 = vld [vmem:[#allocation10] sm:$0xff]
    %357 = vrot.lane.b32.xlu0 %v355, 64
    %v358 = vpop.permute.xlu0 %357
    %v360 = vmul.f32 %v354, %v358
    %362 = vrot.lane.b32.xlu0 %v360, 64
    %v363 = vpop.permute.xlu0 %362
    %v365 = vadd.f32 %v349, %v363
    %v366 = vpack.c.bf16 %v365, %v365
    %v367 = vld [vmem:[#allocation8] sm:$0xff]
    %v368 = vld [vmem:[#allocation8 + $0x8] sm:$0xff]
    %v369 = vld [vmem:[#allocation8 + $0x10] sm:$0xff]
    %v370 = vld [vmem:[#allocation8 + $0x18] sm:$0xff]
    %v371 = vld [vmem:[#allocation8 + $0x20] sm:$0xff]
    %v372 = vld [vmem:[#allocation8 + $0x28] sm:$0xff]
    %v373 = vld [vmem:[#allocation8 + $0x30] sm:$0xff]
    %v374 = vld [vmem:[#allocation8 + $0x38] sm:$0xff]
    %v375 = vld [vmem:[%s6] sm:$0x3]
    %v377 = vperm.slane %v375, 0
    %v378 = vperm.slane %v375, 1
    %v389 = vunpack.c.l.b16 %v367
    %v390 = vunpack.c.h.b16 %v367
    %v391 = vunpack.c.l.b16 %v368
    %v392 = vunpack.c.h.b16 %v368
    %v393 = vunpack.c.l.b16 %v369
    %v394 = vunpack.c.h.b16 %v369
    %v395 = vunpack.c.l.b16 %v370
    %v396 = vunpack.c.h.b16 %v370
    %v397 = vunpack.c.l.b16 %v371
    %v398 = vunpack.c.h.b16 %v371
    %v399 = vunpack.c.l.b16 %v372
    %v400 = vunpack.c.h.b16 %v372
    %v401 = vunpack.c.l.b16 %v373
    %v402 = vunpack.c.h.b16 %v373
    %v403 = vunpack.c.l.b16 %v374
    %v404 = vunpack.c.h.b16 %v374
    %v405 = vpack.c.b16 %v391, %v389
    %v406 = vpack.c.b16 %v392, %v390
    %v407 = vpack.c.b16 %v395, %v393
    %v408 = vpack.c.b16 %v396, %v394
    %v409 = vpack.c.b16 %v399, %v397
    %v410 = vpack.c.b16 %v400, %v398
    %v411 = vpack.c.b16 %v403, %v401
    %v412 = vpack.c.b16 %v404, %v402
    %vm421 = vcmask 523264
    %v423 = vsel %vm421, %v366, 0
    %425 = vmatpush.bf16.msra.mxu0 0
    %426 = vmatpush.bf16.msra.mxu0 0
    %427 = vmatpush.bf16.msra.mxu0 0
    %428 = vmatpush.bf16.msra.mxu0 0
    %429 = vmatpush.bf16.msra.mxu0 %v411
    %430 = vmatpush.bf16.msra.mxu0 %v409
    %431 = vmatpush.bf16.msra.mxu0 %v407
    %432 = vmatpush.bf16.msra.mxu0 %v405
    %433 = vmatmul.bf16.gmra.mxu0 %v423
    %v434 = vpop.f32.mrf.mxu0
    %v435 = vadd.f32 %v377, %v434
    %v436 = vpop.f32.mrf.mxu0
    %437 = vdwg.mxu0
    %438 = vmatpush.bf16.msra.mxu0 0
    %439 = vmatpush.bf16.msra.mxu0 0
    %440 = vmatpush.bf16.msra.mxu0 0
    %441 = vmatpush.bf16.msra.mxu0 0
    %442 = vmatpush.bf16.msra.mxu0 %v412
    %443 = vmatpush.bf16.msra.mxu0 %v410
    %444 = vmatpush.bf16.msra.mxu0 %v408
    %445 = vmatpush.bf16.msra.mxu0 %v406
    %446 = vmatmul.bf16.gmra.mxu0 %v423
    %v447 = vpop.f32.mrf.mxu0
    %v448 = vadd.f32 %v378, %v447
    %v449 = vpop.f32.mrf.mxu0
    %450 = vdwg.mxu0
    %v451 = vxor.u32 %v435, 2147483648
    %v452 = vxor.u32 %v448, 2147483648
    %v453 = vmul.f32 %v451, 1.442695
    %v454 = vpow.pop %v453
    %v455 = vmul.f32 %v452, 1.442695
    %v456 = vpow.pop %v455
    %v457 = vadd.f32 %v454, 1.0
    %v458 = vadd.f32 %v456, 1.0
    %v459 = vrcp.pop %v457
    %v460 = vmul.f32 %v457, %v459
    %v461 = vsub.f32 1.0, %v460
    %v462 = vmul.f32 %v459, %v461
    %v463 = vadd.f32 %v459, %v462
    %vm464 = vweird.f32 %v457
    %vm465 = vweird.f32 %v459
    %vm466 = vmor %vm464, %vm465
    %v467 = vsel %vm466, %v459, %v463
    %v468 = vand.u32 2147483647, %v457
    %vm469 = vcmp.eq.f32.partialorder %v468, 8.507059e+37
    %v470 = vand.u32 %v457, 2147483648
    %v471 = vor.u32 1.1754944e-38, %v470
    %v472 = vsel %vm469, %v471, %v467
    %v473 = vmul.f32 1.0, %v472
    %v474 = vrcp.pop %v458
    %v475 = vmul.f32 %v458, %v474
    %v476 = vsub.f32 1.0, %v475
    %v477 = vmul.f32 %v474, %v476
    %v478 = vadd.f32 %v474, %v477
    %vm479 = vweird.f32 %v458
    %vm480 = vweird.f32 %v474
    %vm481 = vmor %vm479, %vm480
    %v482 = vsel %vm481, %v474, %v478
    %v483 = vand.u32 2147483647, %v458
    %vm484 = vcmp.eq.f32.partialorder %v483, 8.507059e+37
    %v485 = vand.u32 %v458, 2147483648
    %v486 = vor.u32 1.1754944e-38, %v485
    %v487 = vsel %vm484, %v486, %v482
    %v488 = vmul.f32 1.0, %v487
    %489 = vst [vmem:[#allocation11] sm:$0xff] %v473
    %490 = vst [vmem:[#allocation11 + $0x8] sm:$0xff] %v488
    %491 = vst [vmem:[%s8] sm:$0xff] %v349
    %492 = vst.msk [vmem:[%s8 + $0x8] sm:$0xff] %vm421, %v365
    // Predicated region
    $region54: #{_vae_forward.1} parent=1 // pred_check
      _
    $region55: #{_vae_forward.1} parent=1 // pred_check_branch
      %494 = sbr.rel (0) target = $region57
    $region56: #{_vae_forward.1} parent=1 // pred_region
      _
    $region57: #{_vae_forward.1} parent=1 // pred_fallthru
      _
    // Predicated region
    $region58: #{_vae_forward.1} parent=1 // pred_check
      _
    $region59: #{_vae_forward.1} parent=1 // pred_check_branch
      %496 = sbr.rel (0) target = $region61
    $region60: #{_vae_forward.1} parent=1 // pred_region
      %498 = vsyncadd [#allocation4], 0
      %s500 = sshll.u32 [#allocation11], 4
      %s501 = int_to_ptr.vmem [resolvable:$true] %s500
      %s502 = sshll.u32 %s9, 4
      %s503 = int_to_ptr.hbm [resolvable:$true] %s502
      %505 = dma.vmem_to_hbm [thread:$0]  %s501, 256, %s503, [#allocation4]
    $region61: #{_vae_forward.1} parent=1 // pred_fallthru
      _
    // Predicated region
    $region62: #{_vae_forward.1} parent=1 // pred_check
      _
    $region63: #{_vae_forward.1} parent=1 // pred_check_branch
      %507 = sbr.rel (0) target = $region65
    $region64: #{_vae_forward.1} parent=1 // pred_region
      _
    $region65: #{_vae_forward.1} parent=1 // pred_fallthru
      _
    // Predicated region
    $region66: #{_vae_forward.1} parent=1 // pred_check
      _
    $region67: #{_vae_forward.1} parent=1 // pred_check_branch
      %509 = sbr.rel (0) target = $region69
    $region68: #{_vae_forward.1} parent=1 // pred_region
      %511 = dma.done [#allocation4], 256
    $region69: #{_vae_forward.1} parent=1 // pred_fallthru
      _
    %512 = vsyncpa [#allocation3], 1
    %513 = vsyncpa [#allocation6], 1
    %514 = vsyncpa [#allocation9], 1
    %515 = vsyncpa [#allocation4], 1

</llo_original>
